<compile_context>
chip_gen: v7x
topology: tpu7x:2x2x1
jax: 0.10.0
libtpu: 0.0.40
codegen_flags: <defaults>
</compile_context>

<pallas_src>
import jax
import jax.numpy as jnp
from jax.experimental import pallas as pl
from jax.experimental.pallas import tpu as pltpu


# ----------------------------------------------------------------------------
# Pallas kernel: fused 1x1-conv heads  (W_head @ x per spatial tile + bias)
# ----------------------------------------------------------------------------
def _head_kernel(x_ref, wc_ref, wr_ref, wd_ref, bc_ref, br_ref, bd_ref,
                 oc_ref, ore_ref, od_ref):
    # x_ref  : (1, C_in, ts)   activation tile (channels x spatial lanes)
    # w*_ref : (C_head, C_in)  bf16 1x1-conv weights (constant index map -> resident)
    # b*_ref : (C_head, 1)     f32 biases
    # o*_ref : (1, C_head, ts) bf16 head outputs (lane-dense spatial tile)
    x = x_ref[0].astype(jnp.bfloat16)
    oc_ref[0] = (jnp.dot(wc_ref[...], x, preferred_element_type=jnp.float32)
                 + bc_ref[...]).astype(oc_ref.dtype)
    ore_ref[0] = (jnp.dot(wr_ref[...], x, preferred_element_type=jnp.float32)
                  + br_ref[...]).astype(ore_ref.dtype)
    od_ref[0] = (jnp.dot(wd_ref[...], x, preferred_element_type=jnp.float32)
                 + bd_ref[...]).astype(od_ref.dtype)
    # TODO(synk): an inference-time sigmoid epilogue on the cls logits could be
    # fused here for free (EUP slot idle); omitted to keep forward semantics.


# ----------------------------------------------------------------------------
# Tile selection: biggest lane-dense spatial tile that fits a conservative
# cross-generation VMEM budget, while keeping >= 2 grid steps for v7x.
# ----------------------------------------------------------------------------
_VMEM_TILE_BUDGET = 24 * 1024 * 1024   # double-buffered data tiles, all gens


def _pick_spatial_tile(S, B, C_in, c_total, x_itemsize, max_ts=8192):
    s_ceil = -(-S // 128) * 128
    # bytes per spatial lane across double-buffered x + three bf16 output tiles
    bytes_per_lane = 2 * (C_in * x_itemsize + c_total * 2)
    vmem_cap = max(128, (_VMEM_TILE_BUDGET // bytes_per_lane) // 128 * 128)
    ts = min(max_ts, s_ceil, vmem_cap)
    # v7x: two TensorCores share HBM -> keep at least 2 "parallel" grid steps
    while B * (-(-S // ts)) < 2 and ts > 128:
        ts = max(128, (ts // 2) // 128 * 128)
    return ts


def fused_head_conv(x_bcs, w_cls, w_reg, w_dir, b_cls, b_reg, b_dir):
    """x_bcs: (B, C_in, S); w_*: (C_head, C_in) bf16; b_*: (C_head, 1) f32."""
    B, C_in, S = x_bcs.shape
    c_cls, c_reg, c_dir = w_cls.shape[0], w_reg.shape[0], w_dir.shape[0]
    c_total = c_cls + c_reg + c_dir
    x_itemsize = jnp.dtype(x_bcs.dtype).itemsize

    ts = _pick_spatial_tile(S, B, C_in, c_total, x_itemsize)
    grid = (B, -(-S // ts))          # ragged last spatial block handled by Pallas

    def x_map(b, s):
        return (b, 0, s)

    def o_map(b, s):
        return (b, 0, s)

    def const_map(b, s):
        return (0, 0)

    # explicit per-call VMEM budget: double-buffered x + three output tiles,
    # resident weights/biases, plus headroom for Mosaic internal scratch.
    tile_bytes = 2 * (C_in * ts * x_itemsize + c_total * ts * 2) \
        + c_total * (C_in * 2 + 4)
    vmem_limit = int(min(64 * 1024 * 1024, tile_bytes + (8 << 20)))

    grid_spec = pltpu.PrefetchScalarGridSpec(
        num_scalar_prefetch=0,
        grid=grid,
        in_specs=[
            pl.BlockSpec((1, C_in, ts), x_map),
            pl.BlockSpec((c_cls, C_in), const_map),
            pl.BlockSpec((c_reg, C_in), const_map),
            pl.BlockSpec((c_dir, C_in), const_map),
            pl.BlockSpec((c_cls, 1), const_map),
            pl.BlockSpec((c_reg, 1), const_map),
            pl.BlockSpec((c_dir, 1), const_map),
        ],
        out_specs=[
            pl.BlockSpec((1, c_cls, ts), o_map),
            pl.BlockSpec((1, c_reg, ts), o_map),
            pl.BlockSpec((1, c_dir, ts), o_map),
        ],
    )
    return pl.pallas_call(
        _head_kernel,
        out_shape=(
            jax.ShapeDtypeStruct((B, c_cls, S), jnp.bfloat16),
            jax.ShapeDtypeStruct((B, c_reg, S), jnp.bfloat16),
            jax.ShapeDtypeStruct((B, c_dir, S), jnp.bfloat16),
        ),
        grid_spec=grid_spec,
        compiler_params=pltpu.CompilerParams(
            dimension_semantics=("parallel", "parallel"),
            vmem_limit_bytes=vmem_limit),
    )(x_bcs, w_cls, w_reg, w_dir, b_cls, b_reg, b_dir)


# ----------------------------------------------------------------------------
# DetectionHead (forward conv hot-path) in JAX + Pallas
# ----------------------------------------------------------------------------
class DetectionHeadPallas:
    def __init__(self, input_channels, num_object_classes, num_dir_bins, key):
        self.num_object_classes = num_object_classes
        self.num_dir_bins = num_dir_bins
        self.num_anchor_boxes_per_location = num_dir_bins * num_object_classes

        self.c_cls = self.num_anchor_boxes_per_location * num_object_classes
        self.c_reg = self.num_anchor_boxes_per_location * 7
        self.c_dir = self.num_anchor_boxes_per_location * num_dir_bins

        k1, k2, k3 = jax.random.split(key, 3)
        std = 0.01
        # stored as (C_out_head, C_in): the squeezed nn.Conv2d (C_out, C_in, 1, 1) weight
        self.w_cls = std * jax.random.normal(k1, (self.c_cls, input_channels), jnp.float32)
        self.w_reg = std * jax.random.normal(k2, (self.c_reg, input_channels), jnp.float32)
        self.w_dir = std * jax.random.normal(k3, (self.c_dir, input_channels), jnp.float32)

        prior_prob = 0.01
        bias_init = float(-jnp.log((1.0 - prior_prob) / prior_prob))
        self.b_cls = jnp.full((self.c_cls, 1), bias_init, jnp.float32)  # first conv layer
        self.b_reg = jnp.zeros((self.c_reg, 1), jnp.float32)
        self.b_dir = jnp.zeros((self.c_dir, 1), jnp.float32)

        # bf16 copies fed to the MXU (kept once, no per-call cast traffic)
        self.w_cls_bf16 = self.w_cls.astype(jnp.bfloat16)
        self.w_reg_bf16 = self.w_reg.astype(jnp.bfloat16)
        self.w_dir_bf16 = self.w_dir.astype(jnp.bfloat16)

    def __call__(self, x_nchw):
        """x_nchw: (B, C_in, H, W) -> (cls, reg, dir) logits, NCHW, bf16."""
        B, C_in, H, W = x_nchw.shape
        S = H * W
        x3 = x_nchw.reshape(B, C_in, S)   # free: NCHW is contiguous; no pad/cast

        o_cls, o_reg, o_dir = fused_head_conv(
            x3,
            self.w_cls_bf16, self.w_reg_bf16, self.w_dir_bf16,
            self.b_cls, self.b_reg, self.b_dir)

        bbox_cls_pred = o_cls.reshape(B, self.c_cls, H, W)
        bbox_pred = o_reg.reshape(B, self.c_reg, H, W)
        bbox_dir_cls_pred = o_dir.reshape(B, self.c_dir, H, W)
        # TODO(synk): anchor generation, IoU target assignment, topk/score
        # filtering and CPU nms_3d (generate_batched_pred_bbox /
        # generate_batch_anchor_target) are data-dependent host-side
        # post-processing with no clean Pallas equivalent; the kernel covers
        # the conv hot path only.
        return bbox_cls_pred, bbox_pred, bbox_dir_cls_pred


# ----------------------------------------------------------------------------
# main
# ----------------------------------------------------------------------------
if __name__ == "__main__":
    key = jax.random.PRNGKey(0)
    k_x, k_w = jax.random.split(key)

    # small shapes: batch=2, input_channels=32, feature map 16x16
    B, C_in, H, W = 2, 32, 16, 16
    num_object_classes = 3   # e.g. ['Car', 'Pedestrian', 'Cyclist']
    num_dir_bins = 2

    x = jax.random.normal(k_x, (B, C_in, H, W), jnp.float32)

    head = DetectionHeadPallas(C_in, num_object_classes, num_dir_bins, k_w)
    cls_p, reg_p, dir_p = head(x)
    jax.block_until_ready((cls_p, reg_p, dir_p))

    # sanity check against a pure-JAX f32 reference of the 1x1 convs
    def ref_head(w, b):
        y = jnp.einsum('oc,bchw->bohw', w, x,
                       precision=jax.lax.Precision.HIGHEST)
        return y + b[:, 0][None, :, None, None]

    ref_cls = ref_head(head.w_cls, head.b_cls)
    ref_reg = ref_head(head.w_reg, head.b_reg)
    ref_dir = ref_head(head.w_dir, head.b_dir)

    assert cls_p.shape == (B, head.c_cls, H, W)
    assert reg_p.shape == (B, head.c_reg, H, W)
    assert dir_p.shape == (B, head.c_dir, H, W)
    # bf16 weights/activations + bf16 output cast vs. f32 reference: the cls
    # logits sit near -4.6 (bf16 ulp ~0.03 there), so use a loose abs tol.
    assert jnp.allclose(cls_p.astype(jnp.float32), ref_cls, atol=5e-2)
    assert jnp.allclose(reg_p.astype(jnp.float32), ref_reg, atol=5e-2)
    assert jnp.allclose(dir_p.astype(jnp.float32), ref_dir, atol=5e-2)

    print("KERNEL_OK")
</pallas_src>

<mosaic_0001>
module attributes {stable_mosaic.version = 11 : i64} {
  func.func @_head_kernel(%arg0: i32, %arg1: i32, %arg2: memref<1x32x256xf32, #tpu.memory_space<vmem>>, %arg3: memref<18x32xbf16, #tpu.memory_space<vmem>>, %arg4: memref<42x32xbf16, #tpu.memory_space<vmem>>, %arg5: memref<12x32xbf16, #tpu.memory_space<vmem>>, %arg6: memref<18x1xf32, #tpu.memory_space<vmem>>, %arg7: memref<42x1xf32, #tpu.memory_space<vmem>>, %arg8: memref<12x1xf32, #tpu.memory_space<vmem>>, %arg9: memref<1x18x256xbf16, #tpu.memory_space<vmem>>, %arg10: memref<1x42x256xbf16, #tpu.memory_space<vmem>>, %arg11: memref<1x12x256xbf16, #tpu.memory_space<vmem>>) attributes {dimension_semantics = [#tpu.dimension_semantics<parallel>, #tpu.dimension_semantics<parallel>], iteration_bounds = array<i64: 2, 1>, scalar_prefetch = 0 : i64, scratch_operands = 0 : i64, tpu.core_type = #tpu.core_type<tc>, window_params = [{transform_indices = @transform_0, window_bounds = array<i64: 1, 32, 256>}, {pipeline_mode = #tpu.pipeline_mode<synchronous>, transform_indices = @transform_1, window_bounds = array<i64: 18, 32>}, {pipeline_mode = #tpu.pipeline_mode<synchronous>, transform_indices = @transform_2, window_bounds = array<i64: 42, 32>}, {pipeline_mode = #tpu.pipeline_mode<synchronous>, transform_indices = @transform_3, window_bounds = array<i64: 12, 32>}, {pipeline_mode = #tpu.pipeline_mode<synchronous>, transform_indices = @transform_4, window_bounds = array<i64: 18, 1>}, {pipeline_mode = #tpu.pipeline_mode<synchronous>, transform_indices = @transform_5, window_bounds = array<i64: 42, 1>}, {pipeline_mode = #tpu.pipeline_mode<synchronous>, transform_indices = @transform_6, window_bounds = array<i64: 12, 1>}, {transform_indices = @transform_7, window_bounds = array<i64: 1, 18, 256>}, {transform_indices = @transform_8, window_bounds = array<i64: 1, 42, 256>}, {transform_indices = @transform_9, window_bounds = array<i64: 1, 12, 256>}]} {
    %c0 = arith.constant 0 : index
    %c0_0 = arith.constant 0 : index
    %c0_1 = arith.constant 0 : index
    %0 = vector.load %arg2[%c0, %c0_0, %c0_1] : memref<1x32x256xf32, #tpu.memory_space<vmem>>, vector<1x32x256xf32>
    %1 = vector.shape_cast %0 : vector<1x32x256xf32> to vector<32x256xf32>
    %2 = arith.truncf %1 : vector<32x256xf32> to vector<32x256xbf16>
    %c0_2 = arith.constant 0 : index
    %c0_3 = arith.constant 0 : index
    %3 = vector.load %arg3[%c0_2, %c0_3] : memref<18x32xbf16, #tpu.memory_space<vmem>>, vector<18x32xbf16>
    %cst = arith.constant dense<0.000000e+00> : vector<18x256xf32>
    %4 = tpu.matmul %3, %2, %cst {dimension_numbers = #tpu.dot_dimension_numbers<[1], [0], [0], [1], [0, 0, 1, 1], [], []>} : vector<18x32xbf16>, vector<32x256xbf16>, vector<18x256xf32> -> vector<18x256xf32>
    %c0_4 = arith.constant 0 : index
    %c0_5 = arith.constant 0 : index
    %5 = vector.load %arg6[%c0_4, %c0_5] : memref<18x1xf32, #tpu.memory_space<vmem>>, vector<18x1xf32>
    %6 = vector.broadcast %5 : vector<18x1xf32> to vector<18x256xf32>
    %7 = arith.addf %4, %6 : vector<18x256xf32>
    %8 = arith.truncf %7 : vector<18x256xf32> to vector<18x256xbf16>
    %c0_6 = arith.constant 0 : index
    %c0_7 = arith.constant 0 : index
    %c0_8 = arith.constant 0 : index
    %9 = vector.load %arg9[%c0_6, %c0_7, %c0_8] : memref<1x18x256xbf16, #tpu.memory_space<vmem>>, vector<1x18x256xbf16>
    %10 = vector.shape_cast %9 : vector<1x18x256xbf16> to vector<18x256xbf16>
    %11 = vector.shape_cast %8 : vector<18x256xbf16> to vector<1x18x256xbf16>
    tpu.vector_store %arg9[%c0_6, %c0_7, %c0_8], %11 {strides = array<i32>} : memref<1x18x256xbf16, #tpu.memory_space<vmem>>, vector<1x18x256xbf16>,
    %c0_9 = arith.constant 0 : index
    %c0_10 = arith.constant 0 : index
    %12 = vector.load %arg4[%c0_9, %c0_10] : memref<42x32xbf16, #tpu.memory_space<vmem>>, vector<42x32xbf16>
    %cst_11 = arith.constant dense<0.000000e+00> : vector<42x256xf32>
    %13 = tpu.matmul %12, %2, %cst_11 {dimension_numbers = #tpu.dot_dimension_numbers<[1], [0], [0], [1], [0, 0, 1, 1], [], []>} : vector<42x32xbf16>, vector<32x256xbf16>, vector<42x256xf32> -> vector<42x256xf32>
    %c0_12 = arith.constant 0 : index
    %c0_13 = arith.constant 0 : index
    %14 = vector.load %arg7[%c0_12, %c0_13] : memref<42x1xf32, #tpu.memory_space<vmem>>, vector<42x1xf32>
    %15 = vector.broadcast %14 : vector<42x1xf32> to vector<42x256xf32>
    %16 = arith.addf %13, %15 : vector<42x256xf32>
    %17 = arith.truncf %16 : vector<42x256xf32> to vector<42x256xbf16>
    %c0_14 = arith.constant 0 : index
    %c0_15 = arith.constant 0 : index
    %c0_16 = arith.constant 0 : index
    %18 = vector.load %arg10[%c0_14, %c0_15, %c0_16] : memref<1x42x256xbf16, #tpu.memory_space<vmem>>, vector<1x42x256xbf16>
    %19 = vector.shape_cast %18 : vector<1x42x256xbf16> to vector<42x256xbf16>
    %20 = vector.shape_cast %17 : vector<42x256xbf16> to vector<1x42x256xbf16>
    tpu.vector_store %arg10[%c0_14, %c0_15, %c0_16], %20 {strides = array<i32>} : memref<1x42x256xbf16, #tpu.memory_space<vmem>>, vector<1x42x256xbf16>,
    %c0_17 = arith.constant 0 : index
    %c0_18 = arith.constant 0 : index
    %21 = vector.load %arg5[%c0_17, %c0_18] : memref<12x32xbf16, #tpu.memory_space<vmem>>, vector<12x32xbf16>
    %cst_19 = arith.constant dense<0.000000e+00> : vector<12x256xf32>
    %22 = tpu.matmul %21, %2, %cst_19 {dimension_numbers = #tpu.dot_dimension_numbers<[1], [0], [0], [1], [0, 0, 1, 1], [], []>} : vector<12x32xbf16>, vector<32x256xbf16>, vector<12x256xf32> -> vector<12x256xf32>
    %c0_20 = arith.constant 0 : index
    %c0_21 = arith.constant 0 : index
    %23 = vector.load %arg8[%c0_20, %c0_21] : memref<12x1xf32, #tpu.memory_space<vmem>>, vector<12x1xf32>
    %24 = vector.broadcast %23 : vector<12x1xf32> to vector<12x256xf32>
    %25 = arith.addf %22, %24 : vector<12x256xf32>
    %26 = arith.truncf %25 : vector<12x256xf32> to vector<12x256xbf16>
    %c0_22 = arith.constant 0 : index
    %c0_23 = arith.constant 0 : index
    %c0_24 = arith.constant 0 : index
    %27 = vector.load %arg11[%c0_22, %c0_23, %c0_24] : memref<1x12x256xbf16, #tpu.memory_space<vmem>>, vector<1x12x256xbf16>
    %28 = vector.shape_cast %27 : vector<1x12x256xbf16> to vector<12x256xbf16>
    %29 = vector.shape_cast %26 : vector<12x256xbf16> to vector<1x12x256xbf16>
    tpu.vector_store %arg11[%c0_22, %c0_23, %c0_24], %29 {strides = array<i32>} : memref<1x12x256xbf16, #tpu.memory_space<vmem>>, vector<1x12x256xbf16>,
    return
  }
  func.func @transform_0(%arg0: i32, %arg1: i32) -> (i32, i32, i32) {
    %c0_i32 = arith.constant 0 : i32
    %c0_i32_0 = arith.constant 0 : i32
    return %arg0, %c0_i32, %arg1 : i32, i32, i32
  }
  func.func @transform_1(%arg0: i32, %arg1: i32) -> (i32, i32) {
    %c0_i32 = arith.constant 0 : i32
    %c0_i32_0 = arith.constant 0 : i32
    %c0_i32_1 = arith.constant 0 : i32
    return %c0_i32, %c0_i32_0 : i32, i32
  }
  func.func @transform_2(%arg0: i32, %arg1: i32) -> (i32, i32) {
    %c0_i32 = arith.constant 0 : i32
    %c0_i32_0 = arith.constant 0 : i32
    %c0_i32_1 = arith.constant 0 : i32
    return %c0_i32, %c0_i32_0 : i32, i32
  }
  func.func @transform_3(%arg0: i32, %arg1: i32) -> (i32, i32) {
    %c0_i32 = arith.constant 0 : i32
    %c0_i32_0 = arith.constant 0 : i32
    %c0_i32_1 = arith.constant 0 : i32
    return %c0_i32, %c0_i32_0 : i32, i32
  }
  func.func @transform_4(%arg0: i32, %arg1: i32) -> (i32, i32) {
    %c0_i32 = arith.constant 0 : i32
    %c0_i32_0 = arith.constant 0 : i32
    %c0_i32_1 = arith.constant 0 : i32
    return %c0_i32, %c0_i32_0 : i32, i32
  }
  func.func @transform_5(%arg0: i32, %arg1: i32) -> (i32, i32) {
    %c0_i32 = arith.constant 0 : i32
    %c0_i32_0 = arith.constant 0 : i32
    %c0_i32_1 = arith.constant 0 : i32
    return %c0_i32, %c0_i32_0 : i32, i32
  }
  func.func @transform_6(%arg0: i32, %arg1: i32) -> (i32, i32) {
    %c0_i32 = arith.constant 0 : i32
    %c0_i32_0 = arith.constant 0 : i32
    %c0_i32_1 = arith.constant 0 : i32
    return %c0_i32, %c0_i32_0 : i32, i32
  }
  func.func @transform_7(%arg0: i32, %arg1: i32) -> (i32, i32, i32) {
    %c0_i32 = arith.constant 0 : i32
    %c0_i32_0 = arith.constant 0 : i32
    return %arg0, %c0_i32, %arg1 : i32, i32, i32
  }
  func.func @transform_8(%arg0: i32, %arg1: i32) -> (i32, i32, i32) {
    %c0_i32 = arith.constant 0 : i32
    %c0_i32_0 = arith.constant 0 : i32
    return %arg0, %c0_i32, %arg1 : i32, i32, i32
  }
  func.func @transform_9(%arg0: i32, %arg1: i32) -> (i32, i32, i32) {
    %c0_i32 = arith.constant 0 : i32
    %c0_i32_0 = arith.constant 0 : i32
    return %arg0, %c0_i32, %arg1 : i32, i32, i32
  }
}

</mosaic_0001>

<llo_original>
// kernel: tpu_custom_call.1
$region0: #{tpu_custom_call.1}
  #allocation0 [shape = 'u32[]', space=smem, size = 0x4, offset = 0x4, fixed_abs, tag = 'smem constant byte address 0x4 - core index']
  #allocation1 [shape = 'u32[144,128]{1,0:T(1,128)}', space=vmem, size = 0x12000, scoped, tag = 'internal scratch']
  %s0 = inlined_call_operand.vmem [shape: f32[2,32,256], index: 0, kind: input, shape index: {}]
  %s1 = inlined_call_operand.hbm [shape: bf16[18,32], index: 1, kind: input, shape index: {}]
  %s2 = inlined_call_operand.vmem [shape: bf16[42,32], index: 2, kind: input, shape index: {}]
  %s3 = inlined_call_operand.vmem [shape: bf16[12,32], index: 3, kind: input, shape index: {}]
  %s4 = inlined_call_operand.vmem [shape: f32[18,1], index: 4, kind: input, shape index: {}]
  %s5 = inlined_call_operand.vmem [shape: f32[42,1], index: 5, kind: input, shape index: {}]
  %s6 = inlined_call_operand.vmem [shape: f32[12,1], index: 6, kind: input, shape index: {}]
  %s7 = inlined_call_operand.vmem [shape: bf16[2,18,256], index: 7, kind: output, shape index: {0}]
  %s8 = inlined_call_operand.vmem [shape: bf16[2,42,256], index: 8, kind: output, shape index: {1}]
  %s9 = inlined_call_operand.vmem [shape: bf16[2,12,256], index: 9, kind: output, shape index: {2}]
  %10 = xla_tuple %s7, %s8, %s9
  %s11 = sld [smem:[#allocation0]]
  $region81: #{tpu_custom_call.1} parent=0
    _
  %s13 = ssub.s32 1, %s11
  %s14 = scalar_select 0, %s13, %s11
  $region1: #{tpu_custom_call.1} parent=0
    #allocation2 [shape = 'u8[6144]{0}', space=vmem, size = 0x1800, scoped, tag = 'input window, operand 1, single buffered']
    #allocation3 [shape = 's32[2]{0}', space=sflag, size = 0x8, scoped, tag = 'scoped memory for tpu_custom_call.1']
    %15 = vsyncpa [#allocation3], 0
    loop: start=0, step=1, limit=4
    $region2: #{tpu_custom_call.1} parent=1 // loop_pre_header
      _
    $region3: #{tpu_custom_call.1} parent=1 // loop_header
      %s17 = sphi 0, %s21
      %p18 = scmp.ge.s32.totalorder %s17, 4
      %s24 = sphi 0, %s36
      %s25 = sphi 0, %s32
      %s26 = sphi 0, %s24
      %s27 = sphi 0, %s25
      %s28 = sphi 0, %s26
      %s29 = sphi 0, %s27
      %s41 = sphi 0, %s43
      %s44 = sphi 0, %s41
      %s45 = sphi 0, %s44
      %s61 = sphi 0, %s45
      %s65 = sphi 0, %s65
      %s67 = sphi 0, %s65
      %s68 = sphi 0, %s67
      %s82 = sphi 0, %s68
      %s86 = sphi 0, %s86
      %s88 = sphi 0, %s86
      %s89 = sphi 0, %s88
      %s103 = sphi 0, %s89
      %s107 = sphi 0, %s107
      %s109 = sphi 0, %s107
      %s110 = sphi 0, %s109
      %s124 = sphi 0, %s110
      %s128 = sphi 0, %s128
      %s130 = sphi 0, %s128
      %s131 = sphi 0, %s130
      %s145 = sphi 0, %s131
      %s149 = sphi 0, %s149
      %s151 = sphi 0, %s149
      %s152 = sphi 0, %s151
      %s166 = sphi 0, %s152
      %s170 = sphi 0, %s170
      %s172 = sphi 0, %s170
      %s173 = sphi 0, %s172
      %s187 = sphi 0, %s173
      %s195 = sphi 0, %s197
      %s198 = sphi 0, %s195
      %s199 = sphi 0, %s198
      %s215 = sphi 0, %s199
      %s223 = sphi 0, %s225
      %s226 = sphi 0, %s223
      %s227 = sphi 0, %s226
      %s243 = sphi 0, %s227
      %s251 = sphi 0, %s253
      %s254 = sphi 0, %s251
      %s255 = sphi 0, %s254
      %s271 = sphi 0, %s255
    $region4: #{tpu_custom_call.1} parent=1 // loop_header_branch
      %20 = sbr.rel (%p18) target = $region8
    $region5: #{tpu_custom_call.1} parent=1 // loop_body
      %s22 = ssub.s32 %s17, 1
      %s23 = ssub.s32 %s17, 2
      %s30 = sadd.s32 1, %s25
      %p31 = scmp.ge.s32.totalorder %s30, 1
      %s32 = scalar_select %p31, 0, %s30
      %s33 = sadd.s32 1, %s24
      %s34 = scalar_select %p31, %s33, %s24
      %p35 = scmp.ge.s32.totalorder %s34, 2
      %s36 = scalar_select %p35, 0, %s34
      %s37 = ssub.s32 %s24, %s36
      %s38 = ssub.s32 %s25, %s32
      %s39 = sor.u32 %s37, %s38
      %p40 = scmp.eq.s32.totalorder %s39, 0
      %s42 = sadd.s32 %s41, 1
      %s43 = scalar_select %p40, %s41, %s42
      %p46 = pneg %p40
      %p47 = scmp.eq.s32.totalorder %s17, 1
      %p48 = por %p46, %p47
      %p49 = scmp.ne.s32.totalorder %s41, %s44
      %p50 = scmp.eq.s32.totalorder %s17, 0
      %p51 = por %p49, %p50
      %p52 = scmp.ne.s32.totalorder %s41, %s44
      %p53 = scmp.eq.s32.totalorder %s22, 1
      %p54 = por %p52, %p53
      %p55 = scmp.ne.s32.totalorder %s44, %s45
      %p56 = scmp.eq.s32.totalorder %s22, 0
      %p57 = por %p55, %p56
      %p58 = scmp.ne.s32.totalorder %s44, %s45
      %p59 = scmp.eq.s32.totalorder %s23, 1
      %p60 = por %p58, %p59
      %p62 = scmp.ne.s32.totalorder %s45, %s61
      %p63 = scmp.eq.s32.totalorder %s23, 0
      %p64 = por %p62, %p63
      %s66 = sadd.s32 %s65, 1
      %p69 = scmp.eq.s32.totalorder %s17, 1
      %p70 = scmp.ne.s32.totalorder %s65, %s67
      %p71 = scmp.eq.s32.totalorder %s17, 0
      %p72 = por %p70, %p71
      %p73 = scmp.ne.s32.totalorder %s65, %s67
      %p74 = scmp.eq.s32.totalorder %s22, 1
      %p75 = por %p73, %p74
      %p76 = scmp.ne.s32.totalorder %s67, %s68
      %p77 = scmp.eq.s32.totalorder %s22, 0
      %p78 = por %p76, %p77
      %p79 = scmp.ne.s32.totalorder %s67, %s68
      %p80 = scmp.eq.s32.totalorder %s23, 1
      %p81 = por %p79, %p80
      %p83 = scmp.ne.s32.totalorder %s68, %s82
      %p84 = scmp.eq.s32.totalorder %s23, 0
      %p85 = por %p83, %p84
      %s87 = sadd.s32 %s86, 1
      %p90 = scmp.eq.s32.totalorder %s17, 1
      %p91 = scmp.ne.s32.totalorder %s86, %s88
      %p92 = scmp.eq.s32.totalorder %s17, 0
      %p93 = por %p91, %p92
      %p94 = scmp.ne.s32.totalorder %s86, %s88
      %p95 = scmp.eq.s32.totalorder %s22, 1
      %p96 = por %p94, %p95
      %p97 = scmp.ne.s32.totalorder %s88, %s89
      %p98 = scmp.eq.s32.totalorder %s22, 0
      %p99 = por %p97, %p98
      %p100 = scmp.ne.s32.totalorder %s88, %s89
      %p101 = scmp.eq.s32.totalorder %s23, 1
      %p102 = por %p100, %p101
      %p104 = scmp.ne.s32.totalorder %s89, %s103
      %p105 = scmp.eq.s32.totalorder %s23, 0
      %p106 = por %p104, %p105
      %s108 = sadd.s32 %s107, 1
      %p111 = scmp.eq.s32.totalorder %s17, 1
      %p112 = scmp.ne.s32.totalorder %s107, %s109
      %p113 = scmp.eq.s32.totalorder %s17, 0
      %p114 = por %p112, %p113
      %p115 = scmp.ne.s32.totalorder %s107, %s109
      %p116 = scmp.eq.s32.totalorder %s22, 1
      %p117 = por %p115, %p116
      %p118 = scmp.ne.s32.totalorder %s109, %s110
      %p119 = scmp.eq.s32.totalorder %s22, 0
      %p120 = por %p118, %p119
      %p121 = scmp.ne.s32.totalorder %s109, %s110
      %p122 = scmp.eq.s32.totalorder %s23, 1
      %p123 = por %p121, %p122
      %p125 = scmp.ne.s32.totalorder %s110, %s124
      %p126 = scmp.eq.s32.totalorder %s23, 0
      %p127 = por %p125, %p126
      %s129 = sadd.s32 %s128, 1
      %p132 = scmp.eq.s32.totalorder %s17, 1
      %p133 = scmp.ne.s32.totalorder %s128, %s130
      %p134 = scmp.eq.s32.totalorder %s17, 0
      %p135 = por %p133, %p134
      %p136 = scmp.ne.s32.totalorder %s128, %s130
      %p137 = scmp.eq.s32.totalorder %s22, 1
      %p138 = por %p136, %p137
      %p139 = scmp.ne.s32.totalorder %s130, %s131
      %p140 = scmp.eq.s32.totalorder %s22, 0
      %p141 = por %p139, %p140
      %p142 = scmp.ne.s32.totalorder %s130, %s131
      %p143 = scmp.eq.s32.totalorder %s23, 1
      %p144 = por %p142, %p143
      %p146 = scmp.ne.s32.totalorder %s131, %s145
      %p147 = scmp.eq.s32.totalorder %s23, 0
      %p148 = por %p146, %p147
      %s150 = sadd.s32 %s149, 1
      %p153 = scmp.eq.s32.totalorder %s17, 1
      %p154 = scmp.ne.s32.totalorder %s149, %s151
      %p155 = scmp.eq.s32.totalorder %s17, 0
      %p156 = por %p154, %p155
      %p157 = scmp.ne.s32.totalorder %s149, %s151
      %p158 = scmp.eq.s32.totalorder %s22, 1
      %p159 = por %p157, %p158
      %p160 = scmp.ne.s32.totalorder %s151, %s152
      %p161 = scmp.eq.s32.totalorder %s22, 0
      %p162 = por %p160, %p161
      %p163 = scmp.ne.s32.totalorder %s151, %s152
      %p164 = scmp.eq.s32.totalorder %s23, 1
      %p165 = por %p163, %p164
      %p167 = scmp.ne.s32.totalorder %s152, %s166
      %p168 = scmp.eq.s32.totalorder %s23, 0
      %p169 = por %p167, %p168
      %s171 = sadd.s32 %s170, 1
      %p174 = scmp.eq.s32.totalorder %s17, 1
      %p175 = scmp.ne.s32.totalorder %s170, %s172
      %p176 = scmp.eq.s32.totalorder %s17, 0
      %p177 = por %p175, %p176
      %p178 = scmp.ne.s32.totalorder %s170, %s172
      %p179 = scmp.eq.s32.totalorder %s22, 1
      %p180 = por %p178, %p179
      %p181 = scmp.ne.s32.totalorder %s172, %s173
      %p182 = scmp.eq.s32.totalorder %s22, 0
      %p183 = por %p181, %p182
      %p184 = scmp.ne.s32.totalorder %s172, %s173
      %p185 = scmp.eq.s32.totalorder %s23, 1
      %p186 = por %p184, %p185
      %p188 = scmp.ne.s32.totalorder %s173, %s187
      %p189 = scmp.eq.s32.totalorder %s23, 0
      %p190 = por %p188, %p189
      %s191 = ssub.s32 %s24, %s36
      %s192 = ssub.s32 %s25, %s32
      %s193 = sor.u32 %s191, %s192
      %p194 = scmp.eq.s32.totalorder %s193, 0
      %s196 = sadd.s32 %s195, 1
      %s197 = scalar_select %p194, %s195, %s196
      %p200 = pneg %p194
      %p201 = scmp.eq.s32.totalorder %s17, 1
      %p202 = por %p200, %p201
      %p203 = scmp.ne.s32.totalorder %s195, %s198
      %p204 = scmp.eq.s32.totalorder %s17, 0
      %p205 = por %p203, %p204
      %p206 = scmp.ne.s32.totalorder %s195, %s198
      %p207 = scmp.eq.s32.totalorder %s22, 1
      %p208 = por %p206, %p207
      %p209 = scmp.ne.s32.totalorder %s198, %s199
      %p210 = scmp.eq.s32.totalorder %s22, 0
      %p211 = por %p209, %p210
      %p212 = scmp.ne.s32.totalorder %s198, %s199
      %p213 = scmp.eq.s32.totalorder %s23, 1
      %p214 = por %p212, %p213
      %p216 = scmp.ne.s32.totalorder %s199, %s215
      %p217 = scmp.eq.s32.totalorder %s23, 0
      %p218 = por %p216, %p217
      %s219 = ssub.s32 %s24, %s36
      %s220 = ssub.s32 %s25, %s32
      %s221 = sor.u32 %s219, %s220
      %p222 = scmp.eq.s32.totalorder %s221, 0
      %s224 = sadd.s32 %s223, 1
      %s225 = scalar_select %p222, %s223, %s224
      %p228 = pneg %p222
      %p229 = scmp.eq.s32.totalorder %s17, 1
      %p230 = por %p228, %p229
      %p231 = scmp.ne.s32.totalorder %s223, %s226
      %p232 = scmp.eq.s32.totalorder %s17, 0
      %p233 = por %p231, %p232
      %p234 = scmp.ne.s32.totalorder %s223, %s226
      %p235 = scmp.eq.s32.totalorder %s22, 1
      %p236 = por %p234, %p235
      %p237 = scmp.ne.s32.totalorder %s226, %s227
      %p238 = scmp.eq.s32.totalorder %s22, 0
      %p239 = por %p237, %p238
      %p240 = scmp.ne.s32.totalorder %s226, %s227
      %p241 = scmp.eq.s32.totalorder %s23, 1
      %p242 = por %p240, %p241
      %p244 = scmp.ne.s32.totalorder %s227, %s243
      %p245 = scmp.eq.s32.totalorder %s23, 0
      %p246 = por %p244, %p245
      %s247 = ssub.s32 %s24, %s36
      %s248 = ssub.s32 %s25, %s32
      %s249 = sor.u32 %s247, %s248
      %p250 = scmp.eq.s32.totalorder %s249, 0
      %s252 = sadd.s32 %s251, 1
      %s253 = scalar_select %p250, %s251, %s252
      %p256 = pneg %p250
      %p257 = scmp.eq.s32.totalorder %s17, 1
      %p258 = por %p256, %p257
      %p259 = scmp.ne.s32.totalorder %s251, %s254
      %p260 = scmp.eq.s32.totalorder %s17, 0
      %p261 = por %p259, %p260
      %p262 = scmp.ne.s32.totalorder %s251, %s254
      %p263 = scmp.eq.s32.totalorder %s22, 1
      %p264 = por %p262, %p263
      %p265 = scmp.ne.s32.totalorder %s254, %s255
      %p266 = scmp.eq.s32.totalorder %s22, 0
      %p267 = por %p265, %p266
      %p268 = scmp.ne.s32.totalorder %s254, %s255
      %p269 = scmp.eq.s32.totalorder %s23, 1
      %p270 = por %p268, %p269
      %p272 = scmp.ne.s32.totalorder %s255, %s271
      %p273 = scmp.eq.s32.totalorder %s23, 0
      %p274 = por %p272, %p273
      %p275 = scmp.le.s32.totalorder 1, %s17
      %p276 = scmp.lt.s32.totalorder %s17, 3
      %p277 = pnand %p275, %p276
      %p278 = pneg %p277
      // Predicated region
      $region9: #{tpu_custom_call.1} parent=5 // pred_check
        _
      $region10: #{tpu_custom_call.1} parent=5 // pred_check_branch
        %280 = sbr.rel (%p277) target = $region12
      $region11: #{tpu_custom_call.1} parent=5 // pred_region
        %s281 = ssub.s32 %s17, 1
        // Predicated region
        $region13: #{tpu_custom_call.1} parent=11 // pred_check
          %p282 = pneg %p78
        $region14: #{tpu_custom_call.1} parent=11 // pred_check_branch
          %284 = sbr.rel (%p282) target = $region16
        $region15: #{tpu_custom_call.1} parent=11 // pred_region
          %s286 = ssub.s32 192, 192
          %287 = vsyncadd [#allocation3], %s286
          %s288 = sshll.u32 [#allocation2], 4
          %s289 = int_to_ptr.vmem [resolvable:$true] %s288
          %294 = dma.hbm_to_vmem [thread:$0]  %s1, 192, %s289, [#allocation3], 64, 64, 4
        $region16: #{tpu_custom_call.1} parent=11 // pred_fallthru
          _
        // Predicated region
        $region17: #{tpu_custom_call.1} parent=11 // pred_check
          %p295 = pneg %p99
        $region18: #{tpu_custom_call.1} parent=11 // pred_check_branch
          %297 = sbr.rel (%p295) target = $region20
        $region19: #{tpu_custom_call.1} parent=11 // pred_region
          _
        $region20: #{tpu_custom_call.1} parent=11 // pred_fallthru
          _
        // Predicated region
        $region21: #{tpu_custom_call.1} parent=11 // pred_check
          %p298 = pneg %p120
        $region22: #{tpu_custom_call.1} parent=11 // pred_check_branch
          %300 = sbr.rel (%p298) target = $region24
        $region23: #{tpu_custom_call.1} parent=11 // pred_region
          _
        $region24: #{tpu_custom_call.1} parent=11 // pred_fallthru
          _
        // Predicated region
        $region25: #{tpu_custom_call.1} parent=11 // pred_check
          %p301 = pneg %p141
        $region26: #{tpu_custom_call.1} parent=11 // pred_check_branch
          %303 = sbr.rel (%p301) target = $region28
        $region27: #{tpu_custom_call.1} parent=11 // pred_region
          _
        $region28: #{tpu_custom_call.1} parent=11 // pred_fallthru
          _
        // Predicated region
        $region29: #{tpu_custom_call.1} parent=11 // pred_check
          %p304 = pneg %p162
        $region30: #{tpu_custom_call.1} parent=11 // pred_check_branch
          %306 = sbr.rel (%p304) target = $region32
        $region31: #{tpu_custom_call.1} parent=11 // pred_region
          _
        $region32: #{tpu_custom_call.1} parent=11 // pred_fallthru
          _
        // Predicated region
        $region33: #{tpu_custom_call.1} parent=11 // pred_check
          %p307 = pneg %p183
        $region34: #{tpu_custom_call.1} parent=11 // pred_check_branch
          %309 = sbr.rel (%p307) target = $region36
        $region35: #{tpu_custom_call.1} parent=11 // pred_region
          _
        $region36: #{tpu_custom_call.1} parent=11 // pred_fallthru
          _
      $region12: #{tpu_custom_call.1} parent=5 // pred_fallthru
        _
      %p310 = scmp.lt.s32.totalorder %s17, 2
      // Predicated region
      $region37: #{tpu_custom_call.1} parent=5 // pred_check
        %p311 = pneg %p310
      $region38: #{tpu_custom_call.1} parent=5 // pred_check_branch
        %313 = sbr.rel (%p311) target = $region40
      $region39: #{tpu_custom_call.1} parent=5 // pred_region
        // Predicated region
        $region41: #{tpu_custom_call.1} parent=39 // pred_check
          %p314 = pneg %p51
        $region42: #{tpu_custom_call.1} parent=39 // pred_check_branch
          %316 = sbr.rel (%p314) target = $region44
        $region43: #{tpu_custom_call.1} parent=39 // pred_region
          %s317 = smul.u32 2, %s25
          %p318 = scmp.lt.s32.totalorder %s24, 1
          %s319 = scalar_select %p318, %s24, 1
          %p320 = scmp.lt.s32.totalorder %s317, 1
          %s321 = scalar_select %p320, %s317, 1
          %s322 = smul.addr %s319, 8
          %s323 = sadd.s32 %s321, %s322
          %s324 = smul.addr %s323, 8
          %s325 = scalar_lea.vmem %s0, %s324
          %s326 = smul.u32 2, %s25
        $region44: #{tpu_custom_call.1} parent=39 // pred_fallthru
          _
      $region40: #{tpu_custom_call.1} parent=5 // pred_fallthru
        _
      %p327 = scmp.le.s32.totalorder 1, %s17
      %p328 = scmp.lt.s32.totalorder %s17, 3
      %p329 = pnand %p327, %p328
      %p330 = pneg %p329
      // Predicated region
      $region45: #{tpu_custom_call.1} parent=5 // pred_check
        _
      $region46: #{tpu_custom_call.1} parent=5 // pred_check_branch
        %332 = sbr.rel (%p329) target = $region48
      $region47: #{tpu_custom_call.1} parent=5 // pred_region
        %s333 = ssub.s32 %s17, 1
        // Predicated region
        $region49: #{tpu_custom_call.1} parent=47 // pred_check
          %p334 = pneg %p78
        $region50: #{tpu_custom_call.1} parent=47 // pred_check_branch
          %336 = sbr.rel (%p334) target = $region52
        $region51: #{tpu_custom_call.1} parent=47 // pred_region
          %337 = dma.done [#allocation3], 192
        $region52: #{tpu_custom_call.1} parent=47 // pred_fallthru
          _
        %s338 = smul.u32 2, %s27
        %p339 = scmp.lt.s32.totalorder %s26, 1
        %s340 = scalar_select %p339, %s26, 1
        %p341 = scmp.lt.s32.totalorder %s338, 1
        %s342 = scalar_select %p341, %s338, 1
        %s343 = smul.addr %s340, 8
        %s344 = sadd.s32 %s342, %s343
        %s345 = smul.addr %s344, 8
        %s346 = scalar_lea.vmem %s0, %s345
        %p347 = pneg %p57
        %p348 = pneg %p54
        %p349 = pneg %p78
        %p350 = pneg %p75
        %p351 = pneg %p99
        %p352 = pneg %p96
        %p353 = pneg %p120
        %p354 = pneg %p117
        %p355 = pneg %p141
        %p356 = pneg %p138
        %p357 = pneg %p162
        %p358 = pneg %p159
        %p359 = pneg %p183
        %p360 = pneg %p180
        %p361 = pneg %p211
        %p362 = pneg %p208
        %s363 = smul.u32 2, %s27
        %p364 = scmp.lt.s32.totalorder %s26, 1
        %s365 = scalar_select %p364, %s26, 1
        %p366 = scmp.lt.s32.totalorder %s363, 1
        %s367 = scalar_select %p366, %s363, 1
        %s368 = smul.addr %s365, 6
        %s369 = sadd.s32 %s367, %s368
        %s370 = smul.addr %s369, 4
        %s371 = scalar_lea.vmem %s7, %s370
        %p372 = pneg %p239
        %p373 = pneg %p236
        %s374 = smul.u32 2, %s27
        %p375 = scmp.lt.s32.totalorder %s26, 1
        %s376 = scalar_select %p375, %s26, 1
        %p377 = scmp.lt.s32.totalorder %s374, 1
        %s378 = scalar_select %p377, %s374, 1
        %s379 = smul.addr %s376, 12
        %s380 = sadd.s32 %s378, %s379
        %s381 = smul.addr %s380, 4
        %s382 = scalar_lea.vmem %s8, %s381
        %p383 = pneg %p267
        %p384 = pneg %p264
        %s385 = smul.u32 2, %s27
        %p386 = scmp.lt.s32.totalorder %s26, 1
        %s387 = scalar_select %p386, %s26, 1
        %p388 = scmp.lt.s32.totalorder %s385, 1
        %s389 = scalar_select %p388, %s385, 1
        %s390 = smul.addr %s387, 4
        %s391 = sadd.s32 %s389, %s390
        %s392 = smul.addr %s391, 4
        %s393 = scalar_lea.vmem %s9, %s392
        %s394 = smul.u32 2, %s27
        %p395 = scmp.lt.s32.totalorder %s26, 1
        %s396 = scalar_select %p395, %s26, 1
        %p397 = scmp.lt.s32.totalorder %s394, 1
        %s398 = scalar_select %p397, %s394, 1
        %s399 = smul.addr %s396, 8
        %s400 = sadd.s32 %s398, %s399
        %s401 = smul.addr %s400, 8
        %s402 = scalar_lea.vmem %s0, %s401
        %s403 = smul.u32 2, %s27
        %s404 = smul.u32 2, %s27
        %p405 = scmp.lt.s32.totalorder %s26, 1
        %s406 = scalar_select %p405, %s26, 1
        %p407 = scmp.lt.s32.totalorder %s404, 1
        %s408 = scalar_select %p407, %s404, 1
        %s409 = smul.addr %s406, 6
        %s410 = sadd.s32 %s408, %s409
        %s411 = smul.addr %s410, 4
        %s412 = scalar_lea.vmem %s7, %s411
        %s413 = smul.u32 2, %s27
        %s414 = smul.u32 2, %s27
        %p415 = scmp.lt.s32.totalorder %s26, 1
        %s416 = scalar_select %p415, %s26, 1
        %p417 = scmp.lt.s32.totalorder %s414, 1
        %s418 = scalar_select %p417, %s414, 1
        %s419 = smul.addr %s416, 12
        %s420 = sadd.s32 %s418, %s419
        %s421 = smul.addr %s420, 4
        %s422 = scalar_lea.vmem %s8, %s421
        %s423 = smul.u32 2, %s27
        %s424 = smul.u32 2, %s27
        %p425 = scmp.lt.s32.totalorder %s26, 1
        %s426 = scalar_select %p425, %s26, 1
        %p427 = scmp.lt.s32.totalorder %s424, 1
        %s428 = scalar_select %p427, %s424, 1
        %s429 = smul.addr %s426, 4
        %s430 = sadd.s32 %s428, %s429
        %s431 = smul.addr %s430, 4
        %s432 = scalar_lea.vmem %s9, %s431
        %s433 = smul.u32 2, %s27
        %v435 = vld [vmem:[%s402] sm:$0xff]
        %v436 = vld [vmem:[%s402 + $0x8] sm:$0xff]
        %v437 = vld [vmem:[%s402 + $0x10] sm:$0xff]
        %v438 = vld [vmem:[%s402 + $0x18] sm:$0xff]
        %v439 = vld [vmem:[%s402 + $0x20] sm:$0xff]
        %v440 = vld [vmem:[%s402 + $0x28] sm:$0xff]
        %v441 = vld [vmem:[%s402 + $0x30] sm:$0xff]
        %v442 = vld [vmem:[%s402 + $0x38] sm:$0xff]
        %v443 = vpack.c.bf16 %v437, %v435
        %v444 = vpack.c.bf16 %v438, %v436
        %v445 = vpack.c.bf16 %v441, %v439
        %v446 = vpack.c.bf16 %v442, %v440
        %v447 = vld [vmem:[#allocation2] sm:$0xf]
        %v448 = vld [vmem:[#allocation2 + $0x4] sm:$0xf]
        %v449 = vld [vmem:[#allocation2 + $0x8] sm:$0x1]
        %v450 = vld [vmem:[%s4] sm:$0xff]
        %v451 = vld [vmem:[%s4 + $0x8] sm:$0xff]
        %v452 = vld [vmem:[%s4 + $0x10] sm:$0x3]
        %454 = vset.pattern.permute.xlu0 0
        %455 = vperm.xlu0 %454, %v450
        %v456 = vpop.permute.xlu0 %455
        %459 = vset.pattern.permute.xlu0 0
        %460 = vperm.xlu0 %459, %v451
        %v461 = vpop.permute.xlu0 %460
        %464 = vset.pattern.permute.xlu0 0
        %465 = vperm.xlu0 %464, %v452
        %v466 = vpop.permute.xlu0 %465
        %v471 = vunpack.c.l.b16 %v447
        %v472 = vunpack.c.l.b16 %v448
        %v473 = vunpack.c.l.b16 %v449
        %v474 = vpack.c.b16 %v472, %v471
        %v475 = vpack.c.b16 %v473, %v473
        %vm476 = vcmask 261120
        %v478 = vsel %vm476, %v474, 0
        %v481 = vsel %vm476, %v475, 0
        %483 = vmatprep.subr.bf16.mxu0 %v444
        %484 = vmatpush1.bf16.msra.mxu0 %v443
        %485 = vmatprep.subr.bf16.mxu0 %v446
        %486 = vmatpush1.bf16.msra.mxu0 %v445
        %487 = vmatprep.subr.bf16.mxu0 0
        %488 = vmatpush1.bf16.msra.mxu0 0
        %489 = vmatprep.subr.bf16.mxu0 0
        %490 = vmatpush1.bf16.msra.mxu0 0
        %491 = vmatprep.subr.bf16.mxu0 0
        %492 = vmatpush1.bf16.msra.mxu0 0
        %493 = vmatprep.subr.bf16.mxu0 0
        %494 = vmatpush1.bf16.msra.mxu0 0
        %495 = vmatprep.subr.bf16.mxu0 0
        %496 = vmatpush1.bf16.msra.mxu0 0
        %497 = vmatprep.subr.bf16.mxu0 0
        %498 = vmatpush1.bf16.msra.mxu0 0
        %499 = vmatprep.subr.bf16.mxu0 0
        %500 = vmatpush1.bf16.msra.mxu0 0
        %501 = vmatprep.subr.bf16.mxu0 0
        %502 = vmatpush1.bf16.msra.mxu0 0
        %503 = vmatprep.subr.bf16.mxu0 0
        %504 = vmatpush1.bf16.msra.mxu0 0
        %505 = vmatprep.subr.bf16.mxu0 0
        %506 = vmatpush1.bf16.msra.mxu0 0
        %507 = vmatprep.subr.bf16.mxu0 0
        %508 = vmatpush1.bf16.msra.mxu0 0
        %509 = vmatprep.subr.bf16.mxu0 0
        %510 = vmatpush1.bf16.msra.mxu0 0
        %511 = vmatprep.subr.bf16.mxu0 0
        %512 = vmatpush1.bf16.msra.mxu0 0
        %513 = vmatprep.subr.bf16.mxu0 0
        %514 = vmatpush1.bf16.msra.mxu0 0
        %515 = vmatprep.mubr.bf16.mxu0 0
        %516 = vmatmul.mubr.bf16.gmra.mrb[0].mxu0 %v478
        %v517 = vpop.f32.mrb[0].mxu0
        %v518 = vadd.f32 %v456, %v517
        %v519 = vpop.f32.mrb[0].mxu0
        %v520 = vadd.f32 %v456, %v519
        %v521 = vpop.f32.mrb[0].mxu0
        %v522 = vadd.f32 %v461, %v521
        %v523 = vpop.f32.mrb[0].mxu0
        %v524 = vadd.f32 %v461, %v523
        %525 = vmatprep.mubr.bf16.mxu0 0
        %526 = vmatmul.mubr.bf16.gmra.mrb[0].mxu0 %v481
        %v527 = vpop.f32.mrb[0].mxu0
        %v528 = vadd.f32 %v466, %v527
        %v529 = vpop.f32.mrb[0].mxu0
        %v530 = vadd.f32 %v466, %v529
        %v531 = vpop.f32.mrb[0].mxu0
        %v532 = vpop.f32.mrb[0].mxu0
        %533 = vdwg.mxu0
        %v534 = vpack.c.bf16 %v522, %v518
        %v535 = vpack.c.bf16 %v524, %v520
        %v536 = vpack.c.bf16 %v528, %v528
        %v537 = vpack.c.bf16 %v530, %v530
        %v542 = vunpack.c.l.b16 %v534
        %v543 = vunpack.c.l.b16 %v535
        %v544 = vunpack.c.h.b16 %v534
        %v545 = vunpack.c.h.b16 %v535
        %v546 = vunpack.c.l.b16 %v536
        %v547 = vunpack.c.l.b16 %v537
        %v548 = vpack.c.b16 %v543, %v542
        %v549 = vpack.c.b16 %v545, %v544
        %v550 = vpack.c.b16 %v547, %v546
        %554 = vst [vmem:[%s412] sm:$0xff] %v548
        %555 = vst [vmem:[%s412 + $0x8] sm:$0xff] %v549
        %556 = vst [vmem:[%s412 + $0x10] sm:$0x11] %v550
        %v557 = vld [vmem:[%s2] sm:$0xf]
        %v558 = vld [vmem:[%s2 + $0x4] sm:$0xf]
        %v559 = vld [vmem:[%s2 + $0x8] sm:$0xf]
        %v560 = vld [vmem:[%s2 + $0xc] sm:$0xf]
        %v561 = vld [vmem:[%s2 + $0x10] sm:$0xf]
        %v562 = vld [vmem:[%s2 + $0x14] sm:$0x1]
        %v563 = vld [vmem:[%s5] sm:$0xff]
        %v564 = vld [vmem:[%s5 + $0x8] sm:$0xff]
        %v565 = vld [vmem:[%s5 + $0x10] sm:$0xff]
        %v566 = vld [vmem:[%s5 + $0x18] sm:$0xff]
        %v567 = vld [vmem:[%s5 + $0x20] sm:$0xff]
        %v568 = vld [vmem:[%s5 + $0x28] sm:$0x3]
        %570 = vset.pattern.permute.xlu0 0
        %571 = vperm.xlu0 %570, %v563
        %v572 = vpop.permute.xlu0 %571
        %575 = vset.pattern.permute.xlu0 0
        %576 = vperm.xlu0 %575, %v564
        %v577 = vpop.permute.xlu0 %576
        %580 = vset.pattern.permute.xlu0 0
        %581 = vperm.xlu0 %580, %v565
        %v582 = vpop.permute.xlu0 %581
        %585 = vset.pattern.permute.xlu0 0
        %586 = vperm.xlu0 %585, %v566
        %v587 = vpop.permute.xlu0 %586
        %590 = vset.pattern.permute.xlu0 0
        %591 = vperm.xlu0 %590, %v567
        %v592 = vpop.permute.xlu0 %591
        %595 = vset.pattern.permute.xlu0 0
        %596 = vperm.xlu0 %595, %v568
        %v597 = vpop.permute.xlu0 %596
        %v605 = vunpack.c.l.b16 %v557
        %v606 = vunpack.c.l.b16 %v558
        %v607 = vunpack.c.l.b16 %v559
        %v608 = vunpack.c.l.b16 %v560
        %v609 = vunpack.c.l.b16 %v561
        %v610 = vunpack.c.l.b16 %v562
        %v611 = vpack.c.b16 %v606, %v605
        %v612 = vpack.c.b16 %v608, %v607
        %v613 = vpack.c.b16 %v610, %v609
        %v615 = vsel %vm476, %v611, 0
        %v618 = vsel %vm476, %v612, 0
        %v621 = vsel %vm476, %v613, 0
        %623 = vmatprep.subr.bf16.mxu0 %v444
        %624 = vmatpush1.bf16.msra.mxu0 %v443
        %625 = vmatprep.subr.bf16.mxu0 %v446
        %626 = vmatpush1.bf16.msra.mxu0 %v445
        %627 = vmatprep.subr.bf16.mxu0 0
        %628 = vmatpush1.bf16.msra.mxu0 0
        %629 = vmatprep.subr.bf16.mxu0 0
        %630 = vmatpush1.bf16.msra.mxu0 0
        %631 = vmatprep.subr.bf16.mxu0 0
        %632 = vmatpush1.bf16.msra.mxu0 0
        %633 = vmatprep.subr.bf16.mxu0 0
        %634 = vmatpush1.bf16.msra.mxu0 0
        %635 = vmatprep.subr.bf16.mxu0 0
        %636 = vmatpush1.bf16.msra.mxu0 0
        %637 = vmatprep.subr.bf16.mxu0 0
        %638 = vmatpush1.bf16.msra.mxu0 0
        %639 = vmatprep.subr.bf16.mxu0 0
        %640 = vmatpush1.bf16.msra.mxu0 0
        %641 = vmatprep.subr.bf16.mxu0 0
        %642 = vmatpush1.bf16.msra.mxu0 0
        %643 = vmatprep.subr.bf16.mxu0 0
        %644 = vmatpush1.bf16.msra.mxu0 0
        %645 = vmatprep.subr.bf16.mxu0 0
        %646 = vmatpush1.bf16.msra.mxu0 0
        %647 = vmatprep.subr.bf16.mxu0 0
        %648 = vmatpush1.bf16.msra.mxu0 0
        %649 = vmatprep.subr.bf16.mxu0 0
        %650 = vmatpush1.bf16.msra.mxu0 0
        %651 = vmatprep.subr.bf16.mxu0 0
        %652 = vmatpush1.bf16.msra.mxu0 0
        %653 = vmatprep.subr.bf16.mxu0 0
        %654 = vmatpush1.bf16.msra.mxu0 0
        %655 = vmatprep.mubr.bf16.mxu0 0
        %656 = vmatmul.mubr.bf16.gmra.mrb[0].mxu0 %v615
        %v657 = vpop.f32.mrb[0].mxu0
        %v658 = vadd.f32 %v572, %v657
        %v659 = vpop.f32.mrb[0].mxu0
        %v660 = vadd.f32 %v572, %v659
        %v661 = vpop.f32.mrb[0].mxu0
        %v662 = vadd.f32 %v577, %v661
        %v663 = vpop.f32.mrb[0].mxu0
        %v664 = vadd.f32 %v577, %v663
        %665 = vmatprep.mubr.bf16.mxu0 0
        %666 = vmatmul.mubr.bf16.gmra.mrb[0].mxu0 %v618
        %v667 = vpop.f32.mrb[0].mxu0
        %v668 = vadd.f32 %v582, %v667
        %v669 = vpop.f32.mrb[0].mxu0
        %v670 = vadd.f32 %v582, %v669
        %v671 = vpop.f32.mrb[0].mxu0
        %v672 = vadd.f32 %v587, %v671
        %v673 = vpop.f32.mrb[0].mxu0
        %v674 = vadd.f32 %v587, %v673
        %675 = vmatprep.mubr.bf16.mxu0 0
        %676 = vmatmul.mubr.bf16.gmra.mrb[0].mxu0 %v621
        %v677 = vpop.f32.mrb[0].mxu0
        %v678 = vadd.f32 %v592, %v677
        %v679 = vpop.f32.mrb[0].mxu0
        %v680 = vadd.f32 %v592, %v679
        %v681 = vpop.f32.mrb[0].mxu0
        %v682 = vadd.f32 %v597, %v681
        %v683 = vpop.f32.mrb[0].mxu0
        %v684 = vadd.f32 %v597, %v683
        %685 = vdwg.mxu0
        %v686 = vpack.c.bf16 %v662, %v658
        %v687 = vpack.c.bf16 %v664, %v660
        %v688 = vpack.c.bf16 %v672, %v668
        %v689 = vpack.c.bf16 %v674, %v670
        %v690 = vpack.c.bf16 %v682, %v678
        %v691 = vpack.c.bf16 %v684, %v680
        %v698 = vunpack.c.l.b16 %v686
        %v699 = vunpack.c.l.b16 %v687
        %v700 = vunpack.c.h.b16 %v686
        %v701 = vunpack.c.h.b16 %v687
        %v702 = vunpack.c.l.b16 %v688
        %v703 = vunpack.c.l.b16 %v689
        %v704 = vunpack.c.h.b16 %v688
        %v705 = vunpack.c.h.b16 %v689
        %v706 = vunpack.c.l.b16 %v690
        %v707 = vunpack.c.l.b16 %v691
        %v708 = vunpack.c.h.b16 %v690
        %v709 = vunpack.c.h.b16 %v691
        %v710 = vpack.c.b16 %v699, %v698
        %v711 = vpack.c.b16 %v701, %v700
        %v712 = vpack.c.b16 %v703, %v702
        %v713 = vpack.c.b16 %v705, %v704
        %v714 = vpack.c.b16 %v707, %v706
        %v715 = vpack.c.b16 %v709, %v708
        %722 = vst [vmem:[%s422] sm:$0xff] %v710
        %723 = vst [vmem:[%s422 + $0x8] sm:$0xff] %v711
        %724 = vst [vmem:[%s422 + $0x10] sm:$0xff] %v712
        %725 = vst [vmem:[%s422 + $0x18] sm:$0xff] %v713
        %726 = vst [vmem:[%s422 + $0x20] sm:$0xff] %v714
        %727 = vst [vmem:[%s422 + $0x28] sm:$0x11] %v715
        %v728 = vld [vmem:[%s3] sm:$0xf]
        %v729 = vld [vmem:[%s3 + $0x4] sm:$0x3]
        %v730 = vld [vmem:[%s6] sm:$0xff]
        %v731 = vld [vmem:[%s6 + $0x8] sm:$0xf]
        %733 = vset.pattern.permute.xlu0 0
        %734 = vperm.xlu0 %733, %v730
        %v735 = vpop.permute.xlu0 %734
        %738 = vset.pattern.permute.xlu0 0
        %739 = vperm.xlu0 %738, %v731
        %v740 = vpop.permute.xlu0 %739
        %v744 = vunpack.c.l.b16 %v728
        %v745 = vunpack.c.l.b16 %v729
        %v746 = vpack.c.b16 %v745, %v744
        %v748 = vsel %vm476, %v746, 0
        %750 = vmatprep.subr.bf16.mxu0 %v444
        %751 = vmatpush1.bf16.msra.mxu0 %v443
        %752 = vmatprep.subr.bf16.mxu0 %v446
        %753 = vmatpush1.bf16.msra.mxu0 %v445
        %754 = vmatprep.subr.bf16.mxu0 0
        %755 = vmatpush1.bf16.msra.mxu0 0
        %756 = vmatprep.subr.bf16.mxu0 0
        %757 = vmatpush1.bf16.msra.mxu0 0
        %758 = vmatprep.subr.bf16.mxu0 0
        %759 = vmatpush1.bf16.msra.mxu0 0
        %760 = vmatprep.subr.bf16.mxu0 0
        %761 = vmatpush1.bf16.msra.mxu0 0
        %762 = vmatprep.subr.bf16.mxu0 0
        %763 = vmatpush1.bf16.msra.mxu0 0
        %764 = vmatprep.subr.bf16.mxu0 0
        %765 = vmatpush1.bf16.msra.mxu0 0
        %766 = vmatprep.subr.bf16.mxu0 0
        %767 = vmatpush1.bf16.msra.mxu0 0
        %768 = vmatprep.subr.bf16.mxu0 0
        %769 = vmatpush1.bf16.msra.mxu0 0
        %770 = vmatprep.subr.bf16.mxu0 0
        %771 = vmatpush1.bf16.msra.mxu0 0
        %772 = vmatprep.subr.bf16.mxu0 0
        %773 = vmatpush1.bf16.msra.mxu0 0
        %774 = vmatprep.subr.bf16.mxu0 0
        %775 = vmatpush1.bf16.msra.mxu0 0
        %776 = vmatprep.subr.bf16.mxu0 0
        %777 = vmatpush1.bf16.msra.mxu0 0
        %778 = vmatprep.subr.bf16.mxu0 0
        %779 = vmatpush1.bf16.msra.mxu0 0
        %780 = vmatprep.subr.bf16.mxu0 0
        %781 = vmatpush1.bf16.msra.mxu0 0
        %782 = vmatprep.mubr.bf16.mxu0 0
        %783 = vmatmul.mubr.bf16.gmra.mrb[0].mxu0 %v748
        %v784 = vpop.f32.mrb[0].mxu0
        %v785 = vadd.f32 %v735, %v784
        %v786 = vpop.f32.mrb[0].mxu0
        %v787 = vadd.f32 %v735, %v786
        %v788 = vpop.f32.mrb[0].mxu0
        %v789 = vadd.f32 %v740, %v788
        %v790 = vpop.f32.mrb[0].mxu0
        %v791 = vadd.f32 %v740, %v790
        %792 = vdwg.mxu0
        %v793 = vpack.c.bf16 %v789, %v785
        %v794 = vpack.c.bf16 %v791, %v787
        %v797 = vunpack.c.l.b16 %v793
        %v798 = vunpack.c.l.b16 %v794
        %v799 = vunpack.c.h.b16 %v793
        %v800 = vunpack.c.h.b16 %v794
        %v801 = vpack.c.b16 %v798, %v797
        %v802 = vpack.c.b16 %v800, %v799
        %805 = vst [vmem:[%s432] sm:$0xff] %v801
        %806 = vst [vmem:[%s432 + $0x8] sm:$0x33] %v802
        %s807 = smul.u32 2, %s27
        %p808 = scmp.lt.s32.totalorder %s26, 1
        %s809 = scalar_select %p808, %s26, 1
        %p810 = scmp.lt.s32.totalorder %s807, 1
        %s811 = scalar_select %p810, %s807, 1
        %s812 = smul.addr %s809, 6
        %s813 = sadd.s32 %s811, %s812
        %s814 = smul.addr %s813, 4
        %s815 = scalar_lea.vmem %s7, %s814
        %s816 = smul.u32 2, %s27
        %p817 = scmp.lt.s32.totalorder %s26, 1
        %s818 = scalar_select %p817, %s26, 1
        %p819 = scmp.lt.s32.totalorder %s816, 1
        %s820 = scalar_select %p819, %s816, 1
        %s821 = smul.addr %s818, 12
        %s822 = sadd.s32 %s820, %s821
        %s823 = smul.addr %s822, 4
        %s824 = scalar_lea.vmem %s8, %s823
        %s825 = smul.u32 2, %s27
        %p826 = scmp.lt.s32.totalorder %s26, 1
        %s827 = scalar_select %p826, %s26, 1
        %p828 = scmp.lt.s32.totalorder %s825, 1
        %s829 = scalar_select %p828, %s825, 1
        %s830 = smul.addr %s827, 4
        %s831 = sadd.s32 %s829, %s830
        %s832 = smul.addr %s831, 4
        %s833 = scalar_lea.vmem %s9, %s832
        // Predicated region
        $region53: #{tpu_custom_call.1} parent=47 // pred_check
          %p834 = pneg %p208
        $region54: #{tpu_custom_call.1} parent=47 // pred_check_branch
          %836 = sbr.rel (%p834) target = $region56
        $region55: #{tpu_custom_call.1} parent=47 // pred_region
          %s837 = smul.u32 2, %s27
        $region56: #{tpu_custom_call.1} parent=47 // pred_fallthru
          _
        // Predicated region
        $region57: #{tpu_custom_call.1} parent=47 // pred_check
          %p838 = pneg %p236
        $region58: #{tpu_custom_call.1} parent=47 // pred_check_branch
          %840 = sbr.rel (%p838) target = $region60
        $region59: #{tpu_custom_call.1} parent=47 // pred_region
          %s841 = smul.u32 2, %s27
        $region60: #{tpu_custom_call.1} parent=47 // pred_fallthru
          _
        // Predicated region
        $region61: #{tpu_custom_call.1} parent=47 // pred_check
          %p842 = pneg %p264
        $region62: #{tpu_custom_call.1} parent=47 // pred_check_branch
          %844 = sbr.rel (%p842) target = $region64
        $region63: #{tpu_custom_call.1} parent=47 // pred_region
          %s845 = smul.u32 2, %s27
        $region64: #{tpu_custom_call.1} parent=47 // pred_fallthru
          _
      $region48: #{tpu_custom_call.1} parent=5 // pred_fallthru
        _
      %p846 = scmp.le.s32.totalorder 2, %s17
      // Predicated region
      $region65: #{tpu_custom_call.1} parent=5 // pred_check
        %p847 = pneg %p846
      $region66: #{tpu_custom_call.1} parent=5 // pred_check_branch
        %849 = sbr.rel (%p847) target = $region68
      $region67: #{tpu_custom_call.1} parent=5 // pred_region
        %s850 = ssub.s32 %s17, 2
        // Predicated region
        $region69: #{tpu_custom_call.1} parent=67 // pred_check
          %p851 = pneg %p214
        $region70: #{tpu_custom_call.1} parent=67 // pred_check_branch
          %853 = sbr.rel (%p851) target = $region72
        $region71: #{tpu_custom_call.1} parent=67 // pred_region
          %s854 = smul.u32 2, %s29
          %p855 = scmp.lt.s32.totalorder %s28, 1
          %s856 = scalar_select %p855, %s28, 1
          %p857 = scmp.lt.s32.totalorder %s854, 1
          %s858 = scalar_select %p857, %s854, 1
          %s859 = smul.addr %s856, 6
          %s860 = sadd.s32 %s858, %s859
          %s861 = smul.addr %s860, 4
          %s862 = scalar_lea.vmem %s7, %s861
        $region72: #{tpu_custom_call.1} parent=67 // pred_fallthru
          _
        // Predicated region
        $region73: #{tpu_custom_call.1} parent=67 // pred_check
          %p863 = pneg %p242
        $region74: #{tpu_custom_call.1} parent=67 // pred_check_branch
          %865 = sbr.rel (%p863) target = $region76
        $region75: #{tpu_custom_call.1} parent=67 // pred_region
          %s866 = smul.u32 2, %s29
          %p867 = scmp.lt.s32.totalorder %s28, 1
          %s868 = scalar_select %p867, %s28, 1
          %p869 = scmp.lt.s32.totalorder %s866, 1
          %s870 = scalar_select %p869, %s866, 1
          %s871 = smul.addr %s868, 12
          %s872 = sadd.s32 %s870, %s871
          %s873 = smul.addr %s872, 4
          %s874 = scalar_lea.vmem %s8, %s873
        $region76: #{tpu_custom_call.1} parent=67 // pred_fallthru
          _
        // Predicated region
        $region77: #{tpu_custom_call.1} parent=67 // pred_check
          %p875 = pneg %p270
        $region78: #{tpu_custom_call.1} parent=67 // pred_check_branch
          %877 = sbr.rel (%p875) target = $region80
        $region79: #{tpu_custom_call.1} parent=67 // pred_region
          %s878 = smul.u32 2, %s29
          %p879 = scmp.lt.s32.totalorder %s28, 1
          %s880 = scalar_select %p879, %s28, 1
          %p881 = scmp.lt.s32.totalorder %s878, 1
          %s882 = scalar_select %p881, %s878, 1
          %s883 = smul.addr %s880, 4
          %s884 = sadd.s32 %s882, %s883
          %s885 = smul.addr %s884, 4
          %s886 = scalar_lea.vmem %s9, %s885
        $region80: #{tpu_custom_call.1} parent=67 // pred_fallthru
          _
      $region68: #{tpu_custom_call.1} parent=5 // pred_fallthru
        _
    $region6: #{tpu_custom_call.1} parent=1 // loop_footer
      %s21 = sadd.s32 1, %s17
    $region7: #{tpu_custom_call.1} parent=1 // loop_footer_branch
      %16 = sbr.rel target = $region3
    $region8: #{tpu_custom_call.1} parent=1 // loop_exit
      _
    %887 = vsyncpa [#allocation3], 1
    %s888 = scalar_lea.sflag [#allocation3], 1
    %889 = vsyncpa %s888, 1

</llo_original>
